<compile_context>
chip_gen: v5e
topology: v5e:2x2
jax: 0.10.0
libtpu: 0.0.40
codegen_flags: <defaults>
</compile_context>

<pallas_src>
import functools

import jax
import jax.numpy as jnp
from jax.experimental import pallas as pl
from jax.experimental.pallas import tpu as pltpu


def _bce_partial_kernel(recon_ref, x_ref, out_ref):
    """Writes the partial sum_b mean_d(log_softmax(recon)[b,:] * x[b,:]) for this
    row tile, broadcast into a lane-dense (8, 128) output block."""
    logits = recon_ref[...].astype(jnp.float32)
    xv = x_ref[...].astype(jnp.float32)
    d = logits.shape[1]

    m = jnp.max(logits, axis=1, keepdims=True)                           # [tb, 1]
    lse = jnp.log(jnp.sum(jnp.exp(logits - m), axis=1, keepdims=True))   # [tb, 1]
    sum_lx = jnp.sum(logits * xv, axis=1, keepdims=True)                 # [tb, 1]
    sum_x = jnp.sum(xv, axis=1, keepdims=True)                           # [tb, 1]

    # mean_d(log_softmax(logits) * x) = (sum(logits*x) - (m + lse) * sum(x)) / D
    row_mean = (sum_lx - (m + lse) * sum_x) * (1.0 / d)                  # [tb, 1]
    partial = jnp.sum(row_mean)                                          # scalar

    out_ref[...] = jnp.full(out_ref.shape, partial, dtype=out_ref.dtype)


def _pick_tile_rows(batch, feat, itemsize):
    """Largest row tile that (a) respects sublane packing and (b) keeps each
    input block around ~2 MiB (2 inputs x 2 pipeline buffers ~= 8 MiB VMEM)."""
    sublane = 8 if itemsize >= 4 else (16 if itemsize == 2 else 32)
    target_bytes = 2 * 1024 * 1024
    rows = max(sublane, target_bytes // max(1, feat * itemsize))
    rows = (rows // sublane) * sublane
    rows = min(rows, 1024)
    # no point tiling beyond the (padded) batch
    rows = min(rows, ((batch + sublane - 1) // sublane) * sublane)
    return max(rows, sublane)


def _bce_partial_sums(recon_x, x, tile_rows):
    """Sum over rows of mean_d(log_softmax(recon_x)*x), via per-tile partials."""
    b_pad, feat = recon_x.shape
    num_tiles = b_pad // tile_rows

    out = pl.pallas_call(
        _bce_partial_kernel,
        out_shape=jax.ShapeDtypeStruct((num_tiles * 8, 128), jnp.float32),
        grid_spec=pltpu.PrefetchScalarGridSpec(
            num_scalar_prefetch=0,
            grid=(num_tiles,),
            in_specs=[
                pl.BlockSpec((tile_rows, feat), lambda i: (i, 0)),
                pl.BlockSpec((tile_rows, feat), lambda i: (i, 0)),
            ],
            out_specs=pl.BlockSpec((8, 128), lambda i: (i, 0)),
        ),
        compiler_params=pltpu.CompilerParams(
            dimension_semantics=("parallel",),  # independent tiles -> megacore on v7x
        ),
    )(recon_x, x)

    # each tile's (8,128) block holds one broadcast partial sum; pick one element per tile
    return jnp.sum(out[::8, 0])


@jax.jit
def binary_cross_entropy_loss_softmax(recon_x, x, mu=None, logvar=None, anneal=1.0):
    B, D = recon_x.shape
    itemsize = jnp.dtype(recon_x.dtype).itemsize
    tile_rows = _pick_tile_rows(B, D, itemsize)

    b_pad = ((B + tile_rows - 1) // tile_rows) * tile_rows
    if b_pad != B:
        # zero rows contribute 0 to the partial sums (sum(x)=0 and sum(logits*x)=0)
        pad = ((0, b_pad - B), (0, 0))
        recon_p = jnp.pad(recon_x, pad)
        x_p = jnp.pad(x, pad)
    else:
        recon_p, x_p = recon_x, x

    bce_sum = _bce_partial_sums(recon_p, x_p, tile_rows)
    BCE = -bce_sum / jnp.float32(B)

    if logvar is not None:
        # tiny [B, Z] elementwise reduction — plain JAX, fused by XLA (no 2nd kernel launch)
        lv = logvar.astype(jnp.float32)
        muv = mu.astype(jnp.float32)
        term = 1.0 + lv - muv * muv - jnp.exp(lv)
        KLD = -0.5 * jnp.mean(jnp.mean(term, axis=1))
    else:
        KLD = jnp.zeros_like(BCE)

    return BCE + jnp.asarray(anneal, dtype=jnp.float32) * KLD


def _reference(recon_x, x, mu=None, logvar=None, anneal=1.0):
    logp = jax.nn.log_softmax(recon_x.astype(jnp.float32), axis=1)
    bce = -jnp.mean(jnp.mean(logp * x.astype(jnp.float32), axis=-1))
    if logvar is not None:
        lv = logvar.astype(jnp.float32)
        muv = mu.astype(jnp.float32)
        kld = -0.5 * jnp.mean(jnp.mean(1.0 + lv - muv**2 - jnp.exp(lv), axis=1))
    else:
        kld = jnp.zeros_like(bce)
    return bce + anneal * kld


if __name__ == "__main__":
    key = jax.random.PRNGKey(0)
    k1, k2, k3, k4, k5, k6 = jax.random.split(key, 6)

    # Case 1: full VAE loss (mu / logvar present)
    B, D, Z = 8, 256, 32
    recon_x = jax.random.normal(k1, (B, D), dtype=jnp.float32)
    x = (jax.random.uniform(k2, (B, D)) < 0.1).astype(jnp.float32)
    mu = jax.random.normal(k3, (B, Z), dtype=jnp.float32)
    logvar = 0.1 * jax.random.normal(k4, (B, Z), dtype=jnp.float32)

    loss1 = binary_cross_entropy_loss_softmax(recon_x, x, mu, logvar, anneal=0.7)
    loss1 = jax.block_until_ready(loss1)
    ref1 = _reference(recon_x, x, mu, logvar, anneal=0.7)
    assert jnp.allclose(loss1, ref1, rtol=1e-5, atol=1e-5), (loss1, ref1)

    # Case 2: logvar=None branch + batch not a multiple of the row tile (exercises zero-pad)
    B2, D2 = 6, 384
    recon2 = jax.random.normal(k5, (B2, D2), dtype=jnp.float32)
    x2 = (jax.random.uniform(k6, (B2, D2)) < 0.1).astype(jnp.float32)

    loss2 = binary_cross_entropy_loss_softmax(recon2, x2)
    loss2 = jax.block_until_ready(loss2)
    ref2 = _reference(recon2, x2)
    assert jnp.allclose(loss2, ref2, rtol=1e-5, atol=1e-5), (loss2, ref2)

    print("KERNEL_OK")
</pallas_src>

<mosaic_0001>
module attributes {stable_mosaic.version = 11 : i64} {
  func.func @_bce_partial_kernel(%arg0: i32, %arg1: memref<8x256xf32, #tpu.memory_space<vmem>>, %arg2: memref<8x256xf32, #tpu.memory_space<vmem>>, %arg3: memref<8x128xf32, #tpu.memory_space<vmem>>) attributes {dimension_semantics = [#tpu.dimension_semantics<parallel>], iteration_bounds = array<i64: 1>, scalar_prefetch = 0 : i64, scratch_operands = 0 : i64, tpu.core_type = #tpu.core_type<tc>, window_params = [{transform_indices = @transform_0, window_bounds = array<i64: 8, 256>}, {transform_indices = @transform_1, window_bounds = array<i64: 8, 256>}, {transform_indices = @transform_2, window_bounds = array<i64: 8, 128>}]} {
    %c0 = arith.constant 0 : index
    %c0_0 = arith.constant 0 : index
    %0 = vector.load %arg1[%c0, %c0_0] : memref<8x256xf32, #tpu.memory_space<vmem>>, vector<8x256xf32>
    %c0_1 = arith.constant 0 : index
    %c0_2 = arith.constant 0 : index
    %1 = vector.load %arg2[%c0_1, %c0_2] : memref<8x256xf32, #tpu.memory_space<vmem>>, vector<8x256xf32>
    %cst = arith.constant dense<0xFF800000> : vector<8xf32>
    %2 = vector.multi_reduction <maximumf>, %0, %cst [1] : vector<8x256xf32> to vector<8xf32>
    %3 = vector.shape_cast %2 : vector<8xf32> to vector<8x1xf32>
    %4 = vector.broadcast %3 : vector<8x1xf32> to vector<8x256xf32>
    %5 = arith.subf %0, %4 : vector<8x256xf32>
    %6 = math.exp %5 : vector<8x256xf32>
    %cst_3 = arith.constant dense<0.000000e+00> : vector<8xf32>
    %7 = vector.multi_reduction <add>, %6, %cst_3 [1] : vector<8x256xf32> to vector<8xf32>
    %8 = vector.shape_cast %7 : vector<8xf32> to vector<8x1xf32>
    %9 = math.log %8 : vector<8x1xf32>
    %10 = arith.mulf %0, %1 : vector<8x256xf32>
    %cst_4 = arith.constant dense<0.000000e+00> : vector<8xf32>
    %11 = vector.multi_reduction <add>, %10, %cst_4 [1] : vector<8x256xf32> to vector<8xf32>
    %12 = vector.shape_cast %11 : vector<8xf32> to vector<8x1xf32>
    %cst_5 = arith.constant dense<0.000000e+00> : vector<8xf32>
    %13 = vector.multi_reduction <add>, %1, %cst_5 [1] : vector<8x256xf32> to vector<8xf32>
    %14 = vector.shape_cast %13 : vector<8xf32> to vector<8x1xf32>
    %15 = arith.addf %3, %9 : vector<8x1xf32>
    %16 = arith.mulf %15, %14 : vector<8x1xf32>
    %17 = arith.subf %12, %16 : vector<8x1xf32>
    %cst_6 = arith.constant 3.906250e-03 : f32
    %18 = vector.broadcast %cst_6 : f32 to vector<8x1xf32>
    %19 = arith.mulf %17, %18 : vector<8x1xf32>
    %20 = vector.shape_cast %19 : vector<8x1xf32> to vector<1x8x1xf32>
    %cst_7 = arith.constant dense<0.000000e+00> : vector<1xf32>
    %21 = vector.multi_reduction <add>, %20, %cst_7 [1, 2] : vector<1x8x1xf32> to vector<1xf32>
    %22 = vector.shape_cast %21 : vector<1xf32> to vector<1x1x1xf32>
    %23 = vector.extract %22[0, 0, 0] : f32 from vector<1x1x1xf32>
    %24 = vector.broadcast %23 : f32 to vector<8x128xf32>
    %c0_8 = arith.constant 0 : index
    %c0_9 = arith.constant 0 : index
    %25 = vector.load %arg3[%c0_8, %c0_9] : memref<8x128xf32, #tpu.memory_space<vmem>>, vector<8x128xf32>
    tpu.vector_store %arg3[%c0_8, %c0_9], %24 {strides = array<i32>} : memref<8x128xf32, #tpu.memory_space<vmem>>, vector<8x128xf32>,
    return
  }
  func.func @transform_0(%arg0: i32) -> (i32, i32) {
    %c0_i32 = arith.constant 0 : i32
    %c0_i32_0 = arith.constant 0 : i32
    return %arg0, %c0_i32 : i32, i32
  }
  func.func @transform_1(%arg0: i32) -> (i32, i32) {
    %c0_i32 = arith.constant 0 : i32
    %c0_i32_0 = arith.constant 0 : i32
    return %arg0, %c0_i32 : i32, i32
  }
  func.func @transform_2(%arg0: i32) -> (i32, i32) {
    %c0_i32 = arith.constant 0 : i32
    %c0_i32_0 = arith.constant 0 : i32
    return %arg0, %c0_i32 : i32, i32
  }
}

</mosaic_0001>

<llo_original>
// kernel: binary_cross_entropy_loss_softmax.1
$region0: #{binary_cross_entropy_loss_softmax.1}
  #allocation0 [shape = 'u32[]', space=smem, size = 0x4, offset = 0x4, fixed_abs, tag = 'smem constant byte address 0x4 - core index']
  #allocation1 [shape = 'u32[72,128]{1,0:T(1,128)}', space=vmem, size = 0x9000, scoped, tag = 'internal scratch']
  %s0 = inlined_call_operand.hbm [shape: f32[8,256], index: 0, kind: input, shape index: {}]
  %s1 = inlined_call_operand.hbm [shape: f32[8,256], index: 1, kind: input, shape index: {}]
  %s2 = inlined_call_operand.vmem [shape: f32[8,128], index: 2, kind: output, shape index: {}]
  %s3 = sld [smem:[#allocation0]]
  $region26: #{binary_cross_entropy_loss_softmax.1} parent=0
    _
  %s5 = ssub.s32 1, %s3
  %s6 = scalar_select 0, %s5, %s3
  $region1: #{binary_cross_entropy_loss_softmax.1} parent=0
    #allocation2 [shape = 'u8[8192]{0}', space=vmem, size = 0x2000, scoped, tag = 'input window, operand 0, single buffered']
    #allocation3 [shape = 's32[1]{0}', space=sflag, size = 0x4, scoped, tag = 'scoped memory for binary_cross_entropy_loss_softmax.1']
    #allocation4 [shape = 'u8[8192]{0}', space=vmem, size = 0x2000, scoped, tag = 'input window, operand 1, single buffered']
    #allocation5 [shape = 's32[1]{0}', space=sflag, size = 0x4, scoped, tag = 'scoped memory for binary_cross_entropy_loss_softmax.1']
    %7 = vsyncpa [#allocation3], 0
    %8 = vsyncpa [#allocation5], 0
    // Predicated region
    $region2: #{binary_cross_entropy_loss_softmax.1} parent=1 // pred_check
      _
    $region3: #{binary_cross_entropy_loss_softmax.1} parent=1 // pred_check_branch
      %10 = sbr.rel (0) target = $region5
    $region4: #{binary_cross_entropy_loss_softmax.1} parent=1 // pred_region
      %12 = vsyncadd [#allocation3], 0
      %s14 = sshll.u32 %s0, 4
      %s15 = int_to_ptr.hbm [resolvable:$true] %s14
      %s16 = sshll.u32 [#allocation2], 4
      %s17 = int_to_ptr.vmem [resolvable:$true] %s16
      %19 = dma.hbm_to_vmem [thread:$0]  %s15, 256, %s17, [#allocation3]
    $region5: #{binary_cross_entropy_loss_softmax.1} parent=1 // pred_fallthru
      _
    // Predicated region
    $region6: #{binary_cross_entropy_loss_softmax.1} parent=1 // pred_check
      _
    $region7: #{binary_cross_entropy_loss_softmax.1} parent=1 // pred_check_branch
      %21 = sbr.rel (0) target = $region9
    $region8: #{binary_cross_entropy_loss_softmax.1} parent=1 // pred_region
      %23 = vsyncadd [#allocation5], 0
      %s25 = sshll.u32 %s1, 4
      %s26 = int_to_ptr.hbm [resolvable:$true] %s25
      %s27 = sshll.u32 [#allocation4], 4
      %s28 = int_to_ptr.vmem [resolvable:$true] %s27
      %30 = dma.hbm_to_vmem [thread:$0]  %s26, 256, %s28, [#allocation5]
    $region9: #{binary_cross_entropy_loss_softmax.1} parent=1 // pred_fallthru
      _
    // Predicated region
    $region10: #{binary_cross_entropy_loss_softmax.1} parent=1 // pred_check
      _
    $region11: #{binary_cross_entropy_loss_softmax.1} parent=1 // pred_check_branch
      %32 = sbr.rel (0) target = $region13
    $region12: #{binary_cross_entropy_loss_softmax.1} parent=1 // pred_region
      %34 = dma.done [#allocation3], 256
    $region13: #{binary_cross_entropy_loss_softmax.1} parent=1 // pred_fallthru
      _
    // Predicated region
    $region14: #{binary_cross_entropy_loss_softmax.1} parent=1 // pred_check
      _
    $region15: #{binary_cross_entropy_loss_softmax.1} parent=1 // pred_check_branch
      %36 = sbr.rel (0) target = $region17
    $region16: #{binary_cross_entropy_loss_softmax.1} parent=1 // pred_region
      %38 = dma.done [#allocation5], 256
    $region17: #{binary_cross_entropy_loss_softmax.1} parent=1 // pred_fallthru
      _
    %v39 = vld [vmem:[#allocation2] sm:$0xff]
    %v40 = vld [vmem:[#allocation2 + $0x8] sm:$0xff]
    %v41 = vld [vmem:[#allocation4] sm:$0xff]
    %v42 = vld [vmem:[#allocation4 + $0x8] sm:$0xff]
    %v43 = vmax.f32 %v39, %v40
    %44 = vmax.xlane.f32.xlu0 %v43
    %v45 = vpop.xlane.xlu0 %44
    %v46 = vsub.f32 %v39, %v45
    %v47 = vsub.f32 %v40, %v45
    %v48 = vmul.f32 %v46, 1.442695
    %v49 = vpow.pop %v48
    %v50 = vmul.f32 %v47, 1.442695
    %v51 = vpow.pop %v50
    %v52 = vadd.f32 %v49, %v51
    %53 = vadd.xlane.f32.xlu0 %v52
    %v54 = vpop.xlane.xlu0 %53
    %v55 = vlog2.pop %v54
    %v56 = vmul.f32 %v55, 0.6931472
    %v57 = vmul.f32 %v39, %v41
    %v58 = vmul.f32 %v40, %v42
    %v59 = vadd.f32 %v57, %v58
    %60 = vadd.xlane.f32.xlu0 %v59
    %v61 = vpop.xlane.xlu0 %60
    %v62 = vadd.f32 %v41, %v42
    %63 = vadd.xlane.f32.xlu0 %v62
    %v64 = vpop.xlane.xlu0 %63
    %v65 = vadd.f32 %v45, %v56
    %v66 = vmul.f32 %v65, %v64
    %v67 = vsub.f32 %v61, %v66
    %v68 = vmul.f32 %v67, 0.00390625
    %vm69 = vcmask 7168
    %v70 = vsel %vm69, %v68, 0.0
    %71 = vadd.xlane.f32.xlu0 %v70
    %v72 = vpop.xlane.xlu0 %71
    %v73 = vrot.slane %v72, 4
    %v74 = vadd.f32 %v72, %v73
    %v75 = vrot.slane %v74, 2
    %v76 = vadd.f32 %v74, %v75
    %v77 = vrot.slane %v76, 1
    %v78 = vadd.f32 %v76, %v77
    %s79 = vtos %v78
    %v80 = vstv %s79
    %81 = vst [vmem:[%s2] sm:$0xff] %v80
    // Predicated region
    $region18: #{binary_cross_entropy_loss_softmax.1} parent=1 // pred_check
      _
    $region19: #{binary_cross_entropy_loss_softmax.1} parent=1 // pred_check_branch
      %83 = sbr.rel (0) target = $region21
    $region20: #{binary_cross_entropy_loss_softmax.1} parent=1 // pred_region
      _
    $region21: #{binary_cross_entropy_loss_softmax.1} parent=1 // pred_fallthru
      _
    // Predicated region
    $region22: #{binary_cross_entropy_loss_softmax.1} parent=1 // pred_check
      _
    $region23: #{binary_cross_entropy_loss_softmax.1} parent=1 // pred_check_branch
      %85 = sbr.rel (0) target = $region25
    $region24: #{binary_cross_entropy_loss_softmax.1} parent=1 // pred_region
      _
    $region25: #{binary_cross_entropy_loss_softmax.1} parent=1 // pred_fallthru
      _
    %86 = vsyncpa [#allocation3], 1
    %87 = vsyncpa [#allocation5], 1

</llo_original>
